<compile_context>
chip_gen: v7x
topology: tpu7x:2x2x1
jax: 0.10.0
libtpu: 0.0.40
codegen_flags: <defaults>
</compile_context>

<pallas_src>
import functools

import jax
import jax.numpy as jnp
from jax.experimental import pallas as pl
from jax.experimental.pallas import tpu as pltpu

VOCAB = 100
VOCAB_PAD = 128            # vocab padded to lane width for clean MXU layout
NUM_FEATS = 9
LANE = 128
DEFAULT_BLOCK_N = 2048     # rows per grid step (before VMEM-budget cap)
_VMEM_BUDGET = 40 * 1024 * 1024   # keep well under the 48 MiB scoped limit (v7x: 64 MiB physical)


def _round_up(v, m):
    return ((v + m - 1) // m) * m


def _atom_encoder_kernel(x_ref, emb_ref, out_ref, *, num_feats):
    """x_ref: (bn, F) i32 | emb_ref: (F*128, H_pad) bf16/f32 | out_ref: (bn, H_pad) f32."""
    bn = x_ref.shape[0]
    idx = x_ref[...]                                                  # load indices once per tile
    vocab_iota = jax.lax.broadcasted_iota(jnp.int32, (bn, VOCAB_PAD), 1)
    onehots = [
        (vocab_iota == idx[:, i:i + 1]).astype(emb_ref.dtype)        # (bn, 128) each
        for i in range(num_feats)
    ]
    # Lane-concat of whole 128-lane tiles: vreg placement only, no relayout.
    onehot = jnp.concatenate(onehots, axis=1)                         # (bn, F*128)
    # One fused MXU matmul (K = F*128): cross-feature sum happens inside the MXU.
    out_ref[...] = jnp.dot(onehot, emb_ref[...],
                           preferred_element_type=jnp.float32)


def prepare_tables(emb_weights, compute_dtype=jnp.bfloat16):
    """One-time table preprocessing (hoisted out of the per-call hot path).

    emb_weights: f32 [num_tables, 100, H].
    Returns (flat_table [num_tables*128, H_pad] in compute_dtype, original H).
    Zero padding (vocab rows 100..127, hidden cols H..H_pad) never contributes.
    """
    num_tables, vocab, h = emb_weights.shape
    assert vocab == VOCAB
    h_pad = _round_up(h, LANE)
    emb = jnp.pad(emb_weights, ((0, 0), (0, VOCAB_PAD - vocab), (0, h_pad - h)))
    emb = emb.astype(compute_dtype).reshape(num_tables * VOCAB_PAD, h_pad)
    return emb, h


def _choose_block_n(n, h_pad, f, table_itemsize, requested):
    """Pick the row-tile size under a conservative VMEM budget."""
    # Worst case: the resident table is double-buffered by the pipeline.
    table_bytes = 2 * f * VOCAB_PAD * h_pad * table_itemsize
    per_row = (2 * h_pad * 4                      # f32 out tile, double-buffered
               + 2 * f * 4                        # i32 index tile, double-buffered
               + 2 * f * VOCAB_PAD * table_itemsize  # one-hot + lane-concat temps
               + h_pad * 4)                       # f32 matmul result before the store
    cap = max((_VMEM_BUDGET - table_bytes) // per_row, 16)
    block_n = max(16, min(requested, cap, _round_up(n, 16)))
    block_n = (block_n // 16) * 16
    # Keep >= 2 grid steps when the row count allows it so v7x's two
    # TensorCores both get work from the "parallel" grid axis.
    if n >= 32 and _round_up(n, 16) <= block_n:
        block_n = _round_up(-(-n // 2), 16)
    return block_n


def atom_encoder(x, emb_flat, hidden, *, block_n=DEFAULT_BLOCK_N, trim_output=True):
    """x: int [N] or [N, F] (F <= num_tables); emb_flat, hidden from prepare_tables().

    Returns f32 [N, hidden] (or the padded [N_pad, H_pad] buffer if trim_output=False).
    """
    if x.ndim == 1:
        x = x[:, None]
    n, f = x.shape
    total_rows, h_pad = emb_flat.shape
    num_tables = total_rows // VOCAB_PAD
    assert f <= num_tables

    bn = _choose_block_n(n, h_pad, f, emb_flat.dtype.itemsize, block_n)
    n_pad = _round_up(n, bn)
    if n_pad != n:
        # Padded rows gather index 0; their outputs are trimmed below.
        x = jnp.pad(x, ((0, n_pad - n), (0, 0)))
    x = x.astype(jnp.int32)

    kernel = functools.partial(_atom_encoder_kernel, num_feats=f)
    out = pl.pallas_call(
        kernel,
        out_shape=jax.ShapeDtypeStruct((n_pad, h_pad), jnp.float32),
        grid_spec=pltpu.PrefetchScalarGridSpec(
            num_scalar_prefetch=0,
            grid=(n_pad // bn,),
            in_specs=[
                pl.BlockSpec((bn, f), lambda i: (i, 0)),
                # First f tables of the flattened table; constant block index
                # keeps it resident in VMEM across the whole grid.
                pl.BlockSpec((f * VOCAB_PAD, h_pad), lambda i: (0, 0)),
            ],
            out_specs=pl.BlockSpec((bn, h_pad), lambda i: (i, 0)),
        ),
        compiler_params=pltpu.CompilerParams(
            dimension_semantics=("parallel",),
            vmem_limit_bytes=48 * 1024 * 1024,
        ),
    )(x, emb_flat)

    if trim_output:
        # Preserves the module's exact f32 [N, hidden] contract.  Pipelines
        # that tolerate the zero-padded columns can pass trim_output=False to
        # skip this extra HBM copy (the kernel output is already lane-dense).
        out = out[:n, :hidden]
    return out


def init_params(key, hidden_channels):
    """Deterministic init matching nn.Embedding default: weight ~ N(0, 1)."""
    return jax.random.normal(key, (NUM_FEATS, VOCAB, hidden_channels), jnp.float32)


def reference(x, emb_weights):
    """Pure-JAX, pure-f32 reference matching the PyTorch forward exactly."""
    if x.ndim == 1:
        x = x[:, None]
    out = jnp.zeros((x.shape[0], emb_weights.shape[-1]), jnp.float32)
    for i in range(x.shape[1]):
        out = out + emb_weights[i][x[:, i]]
    return out


if __name__ == "__main__":
    key = jax.random.PRNGKey(0)
    k_emb, k_idx = jax.random.split(key)

    hidden = 32
    n_atoms = 16

    emb_weights = init_params(k_emb, hidden)                           # [9, 100, 32] f32
    x = jax.random.randint(k_idx, (n_atoms, NUM_FEATS), 0, VOCAB,
                           dtype=jnp.int32)                            # [16, 9]

    ref = reference(x, emb_weights)

    # f32 compute path: matches true PyTorch f32 semantics.
    tab_f32, h = prepare_tables(emb_weights, compute_dtype=jnp.float32)
    out_f32 = jax.block_until_ready(atom_encoder(x, tab_f32, h))
    assert out_f32.shape == (n_atoms, hidden)
    assert jnp.allclose(out_f32, ref, atol=1e-4, rtol=1e-4), "f32 mismatch vs reference"

    # Default bf16 table (fast MXU path): loose tolerance vs f32 reference.
    tab_bf16, _ = prepare_tables(emb_weights)
    out_bf16 = jax.block_until_ready(atom_encoder(x, tab_bf16, h))
    assert out_bf16.shape == (n_atoms, hidden)
    assert jnp.allclose(out_bf16, ref, atol=5e-2, rtol=5e-2), "bf16 mismatch vs reference"

    print("KERNEL_OK")
</pallas_src>

<mosaic_0001>
module attributes {stable_mosaic.version = 11 : i64} {
  func.func @_atom_encoder_kernel(%arg0: i32, %arg1: memref<16x9xi32, #tpu.memory_space<vmem>>, %arg2: memref<1152x128xf32, #tpu.memory_space<vmem>>, %arg3: memref<16x128xf32, #tpu.memory_space<vmem>>) attributes {dimension_semantics = [#tpu.dimension_semantics<parallel>], iteration_bounds = array<i64: 1>, scalar_prefetch = 0 : i64, scratch_operands = 0 : i64, tpu.core_type = #tpu.core_type<tc>, window_params = [{transform_indices = @transform_0, window_bounds = array<i64: 16, 9>}, {pipeline_mode = #tpu.pipeline_mode<synchronous>, transform_indices = @transform_1, window_bounds = array<i64: 1152, 128>}, {transform_indices = @transform_2, window_bounds = array<i64: 16, 128>}]} {
    %c0 = arith.constant 0 : index
    %c0_0 = arith.constant 0 : index
    %0 = vector.load %arg1[%c0, %c0_0] : memref<16x9xi32, #tpu.memory_space<vmem>>, vector<16x9xi32>
    %1 = tpu.iota {dimensions = array<i32: 1>} : vector<16x128xi32>
    %2 = vector.extract_strided_slice %0 {offsets = [0, 0], sizes = [16, 1], strides = [1, 1]} : vector<16x9xi32> to vector<16x1xi32>
    %3 = vector.broadcast %2 : vector<16x1xi32> to vector<16x128xi32>
    %4 = arith.cmpi eq, %1, %3 : vector<16x128xi32>
    %5 = arith.extui %4 : vector<16x128xi1> to vector<16x128xi32>
    %6 = arith.sitofp %5 : vector<16x128xi32> to vector<16x128xf32>
    %7 = vector.extract_strided_slice %0 {offsets = [0, 1], sizes = [16, 1], strides = [1, 1]} : vector<16x9xi32> to vector<16x1xi32>
    %8 = vector.broadcast %7 : vector<16x1xi32> to vector<16x128xi32>
    %9 = arith.cmpi eq, %1, %8 : vector<16x128xi32>
    %10 = arith.extui %9 : vector<16x128xi1> to vector<16x128xi32>
    %11 = arith.sitofp %10 : vector<16x128xi32> to vector<16x128xf32>
    %12 = vector.extract_strided_slice %0 {offsets = [0, 2], sizes = [16, 1], strides = [1, 1]} : vector<16x9xi32> to vector<16x1xi32>
    %13 = vector.broadcast %12 : vector<16x1xi32> to vector<16x128xi32>
    %14 = arith.cmpi eq, %1, %13 : vector<16x128xi32>
    %15 = arith.extui %14 : vector<16x128xi1> to vector<16x128xi32>
    %16 = arith.sitofp %15 : vector<16x128xi32> to vector<16x128xf32>
    %17 = vector.extract_strided_slice %0 {offsets = [0, 3], sizes = [16, 1], strides = [1, 1]} : vector<16x9xi32> to vector<16x1xi32>
    %18 = vector.broadcast %17 : vector<16x1xi32> to vector<16x128xi32>
    %19 = arith.cmpi eq, %1, %18 : vector<16x128xi32>
    %20 = arith.extui %19 : vector<16x128xi1> to vector<16x128xi32>
    %21 = arith.sitofp %20 : vector<16x128xi32> to vector<16x128xf32>
    %22 = vector.extract_strided_slice %0 {offsets = [0, 4], sizes = [16, 1], strides = [1, 1]} : vector<16x9xi32> to vector<16x1xi32>
    %23 = vector.broadcast %22 : vector<16x1xi32> to vector<16x128xi32>
    %24 = arith.cmpi eq, %1, %23 : vector<16x128xi32>
    %25 = arith.extui %24 : vector<16x128xi1> to vector<16x128xi32>
    %26 = arith.sitofp %25 : vector<16x128xi32> to vector<16x128xf32>
    %27 = vector.extract_strided_slice %0 {offsets = [0, 5], sizes = [16, 1], strides = [1, 1]} : vector<16x9xi32> to vector<16x1xi32>
    %28 = vector.broadcast %27 : vector<16x1xi32> to vector<16x128xi32>
    %29 = arith.cmpi eq, %1, %28 : vector<16x128xi32>
    %30 = arith.extui %29 : vector<16x128xi1> to vector<16x128xi32>
    %31 = arith.sitofp %30 : vector<16x128xi32> to vector<16x128xf32>
    %32 = vector.extract_strided_slice %0 {offsets = [0, 6], sizes = [16, 1], strides = [1, 1]} : vector<16x9xi32> to vector<16x1xi32>
    %33 = vector.broadcast %32 : vector<16x1xi32> to vector<16x128xi32>
    %34 = arith.cmpi eq, %1, %33 : vector<16x128xi32>
    %35 = arith.extui %34 : vector<16x128xi1> to vector<16x128xi32>
    %36 = arith.sitofp %35 : vector<16x128xi32> to vector<16x128xf32>
    %37 = vector.extract_strided_slice %0 {offsets = [0, 7], sizes = [16, 1], strides = [1, 1]} : vector<16x9xi32> to vector<16x1xi32>
    %38 = vector.broadcast %37 : vector<16x1xi32> to vector<16x128xi32>
    %39 = arith.cmpi eq, %1, %38 : vector<16x128xi32>
    %40 = arith.extui %39 : vector<16x128xi1> to vector<16x128xi32>
    %41 = arith.sitofp %40 : vector<16x128xi32> to vector<16x128xf32>
    %42 = vector.extract_strided_slice %0 {offsets = [0, 8], sizes = [16, 1], strides = [1, 1]} : vector<16x9xi32> to vector<16x1xi32>
    %43 = vector.broadcast %42 : vector<16x1xi32> to vector<16x128xi32>
    %44 = arith.cmpi eq, %1, %43 : vector<16x128xi32>
    %45 = arith.extui %44 : vector<16x128xi1> to vector<16x128xi32>
    %46 = arith.sitofp %45 : vector<16x128xi32> to vector<16x128xf32>
    %47 = tpu.concatenate %6, %11, %16, %21, %26, %31, %36, %41, %46 in 1 : vector<16x128xf32>, vector<16x128xf32>, vector<16x128xf32>, vector<16x128xf32>, vector<16x128xf32>, vector<16x128xf32>, vector<16x128xf32>, vector<16x128xf32>, vector<16x128xf32> -> vector<16x1152xf32>
    %c0_1 = arith.constant 0 : index
    %c0_2 = arith.constant 0 : index
    %48 = vector.load %arg2[%c0_1, %c0_2] : memref<1152x128xf32, #tpu.memory_space<vmem>>, vector<1152x128xf32>
    %cst = arith.constant dense<0.000000e+00> : vector<16x128xf32>
    %49 = tpu.matmul %47, %48, %cst {dimension_numbers = #tpu.dot_dimension_numbers<[1], [0], [0], [1], [0, 0, 1, 1], [], []>} : vector<16x1152xf32>, vector<1152x128xf32>, vector<16x128xf32> -> vector<16x128xf32>
    %c0_3 = arith.constant 0 : index
    %c0_4 = arith.constant 0 : index
    %50 = vector.load %arg3[%c0_3, %c0_4] : memref<16x128xf32, #tpu.memory_space<vmem>>, vector<16x128xf32>
    tpu.vector_store %arg3[%c0_3, %c0_4], %49 {strides = array<i32>} : memref<16x128xf32, #tpu.memory_space<vmem>>, vector<16x128xf32>,
    return
  }
  func.func @transform_0(%arg0: i32) -> (i32, i32) {
    %c0_i32 = arith.constant 0 : i32
    %c0_i32_0 = arith.constant 0 : i32
    return %arg0, %c0_i32 : i32, i32
  }
  func.func @transform_1(%arg0: i32) -> (i32, i32) {
    %c0_i32 = arith.constant 0 : i32
    %c0_i32_0 = arith.constant 0 : i32
    %c0_i32_1 = arith.constant 0 : i32
    return %c0_i32, %c0_i32_0 : i32, i32
  }
  func.func @transform_2(%arg0: i32) -> (i32, i32) {
    %c0_i32 = arith.constant 0 : i32
    %c0_i32_0 = arith.constant 0 : i32
    return %arg0, %c0_i32 : i32, i32
  }
}

</mosaic_0001>

<llo_original>
// kernel: tpu_custom_call.1
$region0: #{tpu_custom_call.1}
  #allocation0 [shape = 'u32[]', space=smem, size = 0x4, offset = 0x4, fixed_abs, tag = 'smem constant byte address 0x4 - core index']
  #allocation1 [shape = 'u32[144,128]{1,0:T(1,128)}', space=vmem, size = 0x12000, scoped, tag = 'internal scratch']
  %s0 = inlined_call_operand.hbm [shape: s32[16,9], index: 0, kind: input, shape index: {}]
  %s1 = inlined_call_operand.hbm [shape: f32[1152,128], index: 1, kind: input, shape index: {}]
  %s2 = inlined_call_operand.hbm [shape: f32[16,128], index: 2, kind: output, shape index: {}]
  %s3 = sld [smem:[#allocation0]]
  $region26: #{tpu_custom_call.1} parent=0
    _
  %s5 = ssub.s32 1, %s3
  %s6 = scalar_select 0, %s5, %s3
  $region1: #{tpu_custom_call.1} parent=0
    #allocation2 [shape = 'u8[8192]{0}', space=vmem, size = 0x2000, scoped, tag = 'input window, operand 0, single buffered']
    #allocation3 [shape = 's32[1]{0}', space=sflag, size = 0x4, scoped, tag = 'scoped memory for tpu_custom_call.1']
    #allocation4 [shape = 's32[1]{0}', space=sflag, size = 0x4, scoped, tag = 'scoped memory for tpu_custom_call.1']
    #allocation5 [shape = 'u8[589824]{0}', space=vmem, size = 0x90000, scoped, tag = 'input window, operand 1, single buffered']
    #allocation6 [shape = 's32[1]{0}', space=sflag, size = 0x4, scoped, tag = 'scoped memory for tpu_custom_call.1']
    #allocation7 [shape = 'u8[8192]{0}', space=vmem, size = 0x2000, scoped, tag = 'output window, operand 0, single buffered']
    %7 = vsyncpa [#allocation3], 0
    %8 = vsyncpa [#allocation6], 0
    %9 = vsyncpa [#allocation4], 0
    // Predicated region
    $region2: #{tpu_custom_call.1} parent=1 // pred_check
      _
    $region3: #{tpu_custom_call.1} parent=1 // pred_check_branch
      %11 = sbr.rel (0) target = $region5
    $region4: #{tpu_custom_call.1} parent=1 // pred_region
      %s13 = ssub.s32 256, 256
      %14 = vsyncadd [#allocation3], %s13
      %s15 = sshll.u32 [#allocation2], 4
      %s16 = int_to_ptr.vmem [resolvable:$true] %s15
      %21 = dma.hbm_to_vmem [thread:$0]  %s0, 256, %s16, [#allocation3], 128, 128, 8
    $region5: #{tpu_custom_call.1} parent=1 // pred_fallthru
      _
    // Predicated region
    $region6: #{tpu_custom_call.1} parent=1 // pred_check
      _
    $region7: #{tpu_custom_call.1} parent=1 // pred_check_branch
      %23 = sbr.rel (0) target = $region9
    $region8: #{tpu_custom_call.1} parent=1 // pred_region
      %s25 = ssub.s32 18432, 18432
      %26 = vsyncadd [#allocation6], %s25
      %s27 = sshll.u32 [#allocation5], 4
      %s28 = int_to_ptr.vmem [resolvable:$true] %s27
      %33 = dma.hbm_to_vmem [thread:$0]  %s1, 18432, %s28, [#allocation6], 128, 128, 8
    $region9: #{tpu_custom_call.1} parent=1 // pred_fallthru
      _
    // Predicated region
    $region10: #{tpu_custom_call.1} parent=1 // pred_check
      _
    $region11: #{tpu_custom_call.1} parent=1 // pred_check_branch
      %35 = sbr.rel (0) target = $region13
    $region12: #{tpu_custom_call.1} parent=1 // pred_region
      %36 = dma.done [#allocation3], 256
    $region13: #{tpu_custom_call.1} parent=1 // pred_fallthru
      _
    // Predicated region
    $region14: #{tpu_custom_call.1} parent=1 // pred_check
      _
    $region15: #{tpu_custom_call.1} parent=1 // pred_check_branch
      %38 = sbr.rel (0) target = $region17
    $region16: #{tpu_custom_call.1} parent=1 // pred_region
      %39 = dma.done [#allocation6], 18432
    $region17: #{tpu_custom_call.1} parent=1 // pred_fallthru
      _
    %v40 = vld [vmem:[#allocation2] sm:$0xff]
    %v41 = vld [vmem:[#allocation2 + $0x8] sm:$0xff]
    %v42 = vlaneseq
    %v43 = vand.u32 %v42, 127
    %44 = vset.pattern.permute.xlu0 0
    %45 = vperm.xlu0 %44, %v40
    %v46 = vpop.permute.xlu0 %45
    %47 = vset.pattern.permute.xlu0 0
    %48 = vperm.xlu0 %47, %v41
    %v49 = vpop.permute.xlu0 %48
    %vm50 = vcmp.eq.s32.totalorder %v43, %v46
    %vm51 = vcmp.eq.s32.totalorder %v43, %v49
    %v52 = vsel %vm50, 1, 0
    %v53 = vsel %vm51, 1, 0
    %v54 = vcvt.s32.f32 %v52
    %v55 = vcvt.s32.f32 %v53
    %56 = vset.pattern.permute.xlu0 1
    %57 = vperm.xlu0 %56, %v40
    %v58 = vpop.permute.xlu0 %57
    %59 = vset.pattern.permute.xlu0 1
    %60 = vperm.xlu0 %59, %v41
    %v61 = vpop.permute.xlu0 %60
    %vm62 = vcmp.eq.s32.totalorder %v43, %v58
    %vm63 = vcmp.eq.s32.totalorder %v43, %v61
    %v64 = vsel %vm62, 1, 0
    %v65 = vsel %vm63, 1, 0
    %v66 = vcvt.s32.f32 %v64
    %v67 = vcvt.s32.f32 %v65
    %68 = vset.pattern.permute.xlu0 2
    %69 = vperm.xlu0 %68, %v40
    %v70 = vpop.permute.xlu0 %69
    %71 = vset.pattern.permute.xlu0 2
    %72 = vperm.xlu0 %71, %v41
    %v73 = vpop.permute.xlu0 %72
    %vm74 = vcmp.eq.s32.totalorder %v43, %v70
    %vm75 = vcmp.eq.s32.totalorder %v43, %v73
    %v76 = vsel %vm74, 1, 0
    %v77 = vsel %vm75, 1, 0
    %v78 = vcvt.s32.f32 %v76
    %v79 = vcvt.s32.f32 %v77
    %80 = vset.pattern.permute.xlu0 3
    %81 = vperm.xlu0 %80, %v40
    %v82 = vpop.permute.xlu0 %81
    %83 = vset.pattern.permute.xlu0 3
    %84 = vperm.xlu0 %83, %v41
    %v85 = vpop.permute.xlu0 %84
    %vm86 = vcmp.eq.s32.totalorder %v43, %v82
    %vm87 = vcmp.eq.s32.totalorder %v43, %v85
    %v88 = vsel %vm86, 1, 0
    %v89 = vsel %vm87, 1, 0
    %v90 = vcvt.s32.f32 %v88
    %v91 = vcvt.s32.f32 %v89
    %92 = vset.pattern.permute.xlu0 4
    %93 = vperm.xlu0 %92, %v40
    %v94 = vpop.permute.xlu0 %93
    %95 = vset.pattern.permute.xlu0 4
    %96 = vperm.xlu0 %95, %v41
    %v97 = vpop.permute.xlu0 %96
    %vm98 = vcmp.eq.s32.totalorder %v43, %v94
    %vm99 = vcmp.eq.s32.totalorder %v43, %v97
    %v100 = vsel %vm98, 1, 0
    %v101 = vsel %vm99, 1, 0
    %v102 = vcvt.s32.f32 %v100
    %v103 = vcvt.s32.f32 %v101
    %104 = vset.pattern.permute.xlu0 5
    %105 = vperm.xlu0 %104, %v40
    %v106 = vpop.permute.xlu0 %105
    %107 = vset.pattern.permute.xlu0 5
    %108 = vperm.xlu0 %107, %v41
    %v109 = vpop.permute.xlu0 %108
    %vm110 = vcmp.eq.s32.totalorder %v43, %v106
    %vm111 = vcmp.eq.s32.totalorder %v43, %v109
    %v112 = vsel %vm110, 1, 0
    %v113 = vsel %vm111, 1, 0
    %v114 = vcvt.s32.f32 %v112
    %v115 = vcvt.s32.f32 %v113
    %116 = vset.pattern.permute.xlu0 6
    %117 = vperm.xlu0 %116, %v40
    %v118 = vpop.permute.xlu0 %117
    %119 = vset.pattern.permute.xlu0 6
    %120 = vperm.xlu0 %119, %v41
    %v121 = vpop.permute.xlu0 %120
    %vm122 = vcmp.eq.s32.totalorder %v43, %v118
    %vm123 = vcmp.eq.s32.totalorder %v43, %v121
    %v124 = vsel %vm122, 1, 0
    %v125 = vsel %vm123, 1, 0
    %v126 = vcvt.s32.f32 %v124
    %v127 = vcvt.s32.f32 %v125
    %128 = vset.pattern.permute.xlu0 7
    %129 = vperm.xlu0 %128, %v40
    %v130 = vpop.permute.xlu0 %129
    %131 = vset.pattern.permute.xlu0 7
    %132 = vperm.xlu0 %131, %v41
    %v133 = vpop.permute.xlu0 %132
    %vm134 = vcmp.eq.s32.totalorder %v43, %v130
    %vm135 = vcmp.eq.s32.totalorder %v43, %v133
    %v136 = vsel %vm134, 1, 0
    %v137 = vsel %vm135, 1, 0
    %v138 = vcvt.s32.f32 %v136
    %v139 = vcvt.s32.f32 %v137
    %140 = vset.pattern.permute.xlu0 8
    %141 = vperm.xlu0 %140, %v40
    %v142 = vpop.permute.xlu0 %141
    %143 = vset.pattern.permute.xlu0 8
    %144 = vperm.xlu0 %143, %v41
    %v145 = vpop.permute.xlu0 %144
    %vm146 = vcmp.eq.s32.totalorder %v43, %v142
    %vm147 = vcmp.eq.s32.totalorder %v43, %v145
    %v148 = vsel %vm146, 1, 0
    %v149 = vsel %vm147, 1, 0
    %v150 = vcvt.s32.f32 %v148
    %v151 = vcvt.s32.f32 %v149
    %v152 = vld [vmem:[#allocation5] sm:$0xff]
    %v153 = vld [vmem:[#allocation5 + $0x8] sm:$0xff]
    %v154 = vld [vmem:[#allocation5 + $0x10] sm:$0xff]
    %v155 = vld [vmem:[#allocation5 + $0x18] sm:$0xff]
    %v156 = vld [vmem:[#allocation5 + $0x20] sm:$0xff]
    %v157 = vld [vmem:[#allocation5 + $0x28] sm:$0xff]
    %v158 = vld [vmem:[#allocation5 + $0x30] sm:$0xff]
    %v159 = vld [vmem:[#allocation5 + $0x38] sm:$0xff]
    %v160 = vld [vmem:[#allocation5 + $0x40] sm:$0xff]
    %v161 = vld [vmem:[#allocation5 + $0x48] sm:$0xff]
    %v162 = vld [vmem:[#allocation5 + $0x50] sm:$0xff]
    %v163 = vld [vmem:[#allocation5 + $0x58] sm:$0xff]
    %v164 = vld [vmem:[#allocation5 + $0x60] sm:$0xff]
    %v165 = vld [vmem:[#allocation5 + $0x68] sm:$0xff]
    %v166 = vld [vmem:[#allocation5 + $0x70] sm:$0xff]
    %v167 = vld [vmem:[#allocation5 + $0x78] sm:$0xff]
    %v168 = vld [vmem:[#allocation5 + $0x80] sm:$0xff]
    %v169 = vld [vmem:[#allocation5 + $0x88] sm:$0xff]
    %v170 = vld [vmem:[#allocation5 + $0x90] sm:$0xff]
    %v171 = vld [vmem:[#allocation5 + $0x98] sm:$0xff]
    %v172 = vld [vmem:[#allocation5 + $0xa0] sm:$0xff]
    %v173 = vld [vmem:[#allocation5 + $0xa8] sm:$0xff]
    %v174 = vld [vmem:[#allocation5 + $0xb0] sm:$0xff]
    %v175 = vld [vmem:[#allocation5 + $0xb8] sm:$0xff]
    %v176 = vld [vmem:[#allocation5 + $0xc0] sm:$0xff]
    %v177 = vld [vmem:[#allocation5 + $0xc8] sm:$0xff]
    %v178 = vld [vmem:[#allocation5 + $0xd0] sm:$0xff]
    %v179 = vld [vmem:[#allocation5 + $0xd8] sm:$0xff]
    %v180 = vld [vmem:[#allocation5 + $0xe0] sm:$0xff]
    %v181 = vld [vmem:[#allocation5 + $0xe8] sm:$0xff]
    %v182 = vld [vmem:[#allocation5 + $0xf0] sm:$0xff]
    %v183 = vld [vmem:[#allocation5 + $0xf8] sm:$0xff]
    %v184 = vld [vmem:[#allocation5 + $0x100] sm:$0xff]
    %v185 = vld [vmem:[#allocation5 + $0x108] sm:$0xff]
    %v186 = vld [vmem:[#allocation5 + $0x110] sm:$0xff]
    %v187 = vld [vmem:[#allocation5 + $0x118] sm:$0xff]
    %v188 = vld [vmem:[#allocation5 + $0x120] sm:$0xff]
    %v189 = vld [vmem:[#allocation5 + $0x128] sm:$0xff]
    %v190 = vld [vmem:[#allocation5 + $0x130] sm:$0xff]
    %v191 = vld [vmem:[#allocation5 + $0x138] sm:$0xff]
    %v192 = vld [vmem:[#allocation5 + $0x140] sm:$0xff]
    %v193 = vld [vmem:[#allocation5 + $0x148] sm:$0xff]
    %v194 = vld [vmem:[#allocation5 + $0x150] sm:$0xff]
    %v195 = vld [vmem:[#allocation5 + $0x158] sm:$0xff]
    %v196 = vld [vmem:[#allocation5 + $0x160] sm:$0xff]
    %v197 = vld [vmem:[#allocation5 + $0x168] sm:$0xff]
    %v198 = vld [vmem:[#allocation5 + $0x170] sm:$0xff]
    %v199 = vld [vmem:[#allocation5 + $0x178] sm:$0xff]
    %v200 = vld [vmem:[#allocation5 + $0x180] sm:$0xff]
    %v201 = vld [vmem:[#allocation5 + $0x188] sm:$0xff]
    %v202 = vld [vmem:[#allocation5 + $0x190] sm:$0xff]
    %v203 = vld [vmem:[#allocation5 + $0x198] sm:$0xff]
    %v204 = vld [vmem:[#allocation5 + $0x1a0] sm:$0xff]
    %v205 = vld [vmem:[#allocation5 + $0x1a8] sm:$0xff]
    %v206 = vld [vmem:[#allocation5 + $0x1b0] sm:$0xff]
    %v207 = vld [vmem:[#allocation5 + $0x1b8] sm:$0xff]
    %v208 = vld [vmem:[#allocation5 + $0x1c0] sm:$0xff]
    %v209 = vld [vmem:[#allocation5 + $0x1c8] sm:$0xff]
    %v210 = vld [vmem:[#allocation5 + $0x1d0] sm:$0xff]
    %v211 = vld [vmem:[#allocation5 + $0x1d8] sm:$0xff]
    %v212 = vld [vmem:[#allocation5 + $0x1e0] sm:$0xff]
    %v213 = vld [vmem:[#allocation5 + $0x1e8] sm:$0xff]
    %v214 = vld [vmem:[#allocation5 + $0x1f0] sm:$0xff]
    %v215 = vld [vmem:[#allocation5 + $0x1f8] sm:$0xff]
    %v216 = vld [vmem:[#allocation5 + $0x200] sm:$0xff]
    %v217 = vld [vmem:[#allocation5 + $0x208] sm:$0xff]
    %v218 = vld [vmem:[#allocation5 + $0x210] sm:$0xff]
    %v219 = vld [vmem:[#allocation5 + $0x218] sm:$0xff]
    %v220 = vld [vmem:[#allocation5 + $0x220] sm:$0xff]
    %v221 = vld [vmem:[#allocation5 + $0x228] sm:$0xff]
    %v222 = vld [vmem:[#allocation5 + $0x230] sm:$0xff]
    %v223 = vld [vmem:[#allocation5 + $0x238] sm:$0xff]
    %v224 = vld [vmem:[#allocation5 + $0x240] sm:$0xff]
    %v225 = vld [vmem:[#allocation5 + $0x248] sm:$0xff]
    %v226 = vld [vmem:[#allocation5 + $0x250] sm:$0xff]
    %v227 = vld [vmem:[#allocation5 + $0x258] sm:$0xff]
    %v228 = vld [vmem:[#allocation5 + $0x260] sm:$0xff]
    %v229 = vld [vmem:[#allocation5 + $0x268] sm:$0xff]
    %v230 = vld [vmem:[#allocation5 + $0x270] sm:$0xff]
    %v231 = vld [vmem:[#allocation5 + $0x278] sm:$0xff]
    %v232 = vld [vmem:[#allocation5 + $0x280] sm:$0xff]
    %v233 = vld [vmem:[#allocation5 + $0x288] sm:$0xff]
    %v234 = vld [vmem:[#allocation5 + $0x290] sm:$0xff]
    %v235 = vld [vmem:[#allocation5 + $0x298] sm:$0xff]
    %v236 = vld [vmem:[#allocation5 + $0x2a0] sm:$0xff]
    %v237 = vld [vmem:[#allocation5 + $0x2a8] sm:$0xff]
    %v238 = vld [vmem:[#allocation5 + $0x2b0] sm:$0xff]
    %v239 = vld [vmem:[#allocation5 + $0x2b8] sm:$0xff]
    %v240 = vld [vmem:[#allocation5 + $0x2c0] sm:$0xff]
    %v241 = vld [vmem:[#allocation5 + $0x2c8] sm:$0xff]
    %v242 = vld [vmem:[#allocation5 + $0x2d0] sm:$0xff]
    %v243 = vld [vmem:[#allocation5 + $0x2d8] sm:$0xff]
    %v244 = vld [vmem:[#allocation5 + $0x2e0] sm:$0xff]
    %v245 = vld [vmem:[#allocation5 + $0x2e8] sm:$0xff]
    %v246 = vld [vmem:[#allocation5 + $0x2f0] sm:$0xff]
    %v247 = vld [vmem:[#allocation5 + $0x2f8] sm:$0xff]
    %v248 = vld [vmem:[#allocation5 + $0x300] sm:$0xff]
    %v249 = vld [vmem:[#allocation5 + $0x308] sm:$0xff]
    %v250 = vld [vmem:[#allocation5 + $0x310] sm:$0xff]
    %v251 = vld [vmem:[#allocation5 + $0x318] sm:$0xff]
    %v252 = vld [vmem:[#allocation5 + $0x320] sm:$0xff]
    %v253 = vld [vmem:[#allocation5 + $0x328] sm:$0xff]
    %v254 = vld [vmem:[#allocation5 + $0x330] sm:$0xff]
    %v255 = vld [vmem:[#allocation5 + $0x338] sm:$0xff]
    %v256 = vld [vmem:[#allocation5 + $0x340] sm:$0xff]
    %v257 = vld [vmem:[#allocation5 + $0x348] sm:$0xff]
    %v258 = vld [vmem:[#allocation5 + $0x350] sm:$0xff]
    %v259 = vld [vmem:[#allocation5 + $0x358] sm:$0xff]
    %v260 = vld [vmem:[#allocation5 + $0x360] sm:$0xff]
    %v261 = vld [vmem:[#allocation5 + $0x368] sm:$0xff]
    %v262 = vld [vmem:[#allocation5 + $0x370] sm:$0xff]
    %v263 = vld [vmem:[#allocation5 + $0x378] sm:$0xff]
    %v264 = vld [vmem:[#allocation5 + $0x380] sm:$0xff]
    %v265 = vld [vmem:[#allocation5 + $0x388] sm:$0xff]
    %v266 = vld [vmem:[#allocation5 + $0x390] sm:$0xff]
    %v267 = vld [vmem:[#allocation5 + $0x398] sm:$0xff]
    %v268 = vld [vmem:[#allocation5 + $0x3a0] sm:$0xff]
    %v269 = vld [vmem:[#allocation5 + $0x3a8] sm:$0xff]
    %v270 = vld [vmem:[#allocation5 + $0x3b0] sm:$0xff]
    %v271 = vld [vmem:[#allocation5 + $0x3b8] sm:$0xff]
    %v272 = vld [vmem:[#allocation5 + $0x3c0] sm:$0xff]
    %v273 = vld [vmem:[#allocation5 + $0x3c8] sm:$0xff]
    %v274 = vld [vmem:[#allocation5 + $0x3d0] sm:$0xff]
    %v275 = vld [vmem:[#allocation5 + $0x3d8] sm:$0xff]
    %v276 = vld [vmem:[#allocation5 + $0x3e0] sm:$0xff]
    %v277 = vld [vmem:[#allocation5 + $0x3e8] sm:$0xff]
    %v278 = vld [vmem:[#allocation5 + $0x3f0] sm:$0xff]
    %v279 = vld [vmem:[#allocation5 + $0x3f8] sm:$0xff]
    %v280 = vld [vmem:[#allocation5 + $0x400] sm:$0xff]
    %v281 = vld [vmem:[#allocation5 + $0x408] sm:$0xff]
    %v282 = vld [vmem:[#allocation5 + $0x410] sm:$0xff]
    %v283 = vld [vmem:[#allocation5 + $0x418] sm:$0xff]
    %v284 = vld [vmem:[#allocation5 + $0x420] sm:$0xff]
    %v285 = vld [vmem:[#allocation5 + $0x428] sm:$0xff]
    %v286 = vld [vmem:[#allocation5 + $0x430] sm:$0xff]
    %v287 = vld [vmem:[#allocation5 + $0x438] sm:$0xff]
    %v288 = vld [vmem:[#allocation5 + $0x440] sm:$0xff]
    %v289 = vld [vmem:[#allocation5 + $0x448] sm:$0xff]
    %v290 = vld [vmem:[#allocation5 + $0x450] sm:$0xff]
    %v291 = vld [vmem:[#allocation5 + $0x458] sm:$0xff]
    %v292 = vld [vmem:[#allocation5 + $0x460] sm:$0xff]
    %v293 = vld [vmem:[#allocation5 + $0x468] sm:$0xff]
    %v294 = vld [vmem:[#allocation5 + $0x470] sm:$0xff]
    %v295 = vld [vmem:[#allocation5 + $0x478] sm:$0xff]
    %296 = vmatprep.subr.mxu0 0.0
    %297 = vmatpush1.msra.mxu0 %v152
    %298 = vmatprep.subr.mxu0 0.0
    %299 = vmatpush1.msra.mxu0 %v153
    %300 = vmatprep.subr.mxu0 0.0
    %301 = vmatpush1.msra.mxu0 %v154
    %302 = vmatprep.subr.mxu0 0.0
    %303 = vmatpush1.msra.mxu0 %v155
    %304 = vmatprep.subr.mxu0 0.0
    %305 = vmatpush1.msra.mxu0 %v156
    %306 = vmatprep.subr.mxu0 0.0
    %307 = vmatpush1.msra.mxu0 %v157
    %308 = vmatprep.subr.mxu0 0.0
    %309 = vmatpush1.msra.mxu0 %v158
    %310 = vmatprep.subr.mxu0 0.0
    %311 = vmatpush1.msra.mxu0 %v159
    %312 = vmatprep.subr.mxu0 0.0
    %313 = vmatpush1.msra.mxu0 %v160
    %314 = vmatprep.subr.mxu0 0.0
    %315 = vmatpush1.msra.mxu0 %v161
    %316 = vmatprep.subr.mxu0 0.0
    %317 = vmatpush1.msra.mxu0 %v162
    %318 = vmatprep.subr.mxu0 0.0
    %319 = vmatpush1.msra.mxu0 %v163
    %320 = vmatprep.subr.mxu0 0.0
    %321 = vmatpush1.msra.mxu0 %v164
    %322 = vmatprep.subr.mxu0 0.0
    %323 = vmatpush1.msra.mxu0 %v165
    %324 = vmatprep.subr.mxu0 0.0
    %325 = vmatpush1.msra.mxu0 %v166
    %326 = vmatprep.subr.mxu0 0.0
    %327 = vmatpush1.msra.mxu0 %v167
    %328 = vmatprep.subr.mxu0 0.0
    %329 = vmatpush1.msra.mxu0 %v168
    %330 = vmatprep.subr.mxu0 0.0
    %331 = vmatpush1.msra.mxu0 %v169
    %332 = vmatprep.subr.mxu0 0.0
    %333 = vmatpush1.msra.mxu0 %v170
    %334 = vmatprep.subr.mxu0 0.0
    %335 = vmatpush1.msra.mxu0 %v171
    %336 = vmatprep.subr.mxu0 0.0
    %337 = vmatpush1.msra.mxu0 %v172
    %338 = vmatprep.subr.mxu0 0.0
    %339 = vmatpush1.msra.mxu0 %v173
    %340 = vmatprep.subr.mxu0 0.0
    %341 = vmatpush1.msra.mxu0 %v174
    %342 = vmatprep.subr.mxu0 0.0
    %343 = vmatpush1.msra.mxu0 %v175
    %344 = vmatprep.subr.mxu0 0.0
    %345 = vmatpush1.msra.mxu0 %v176
    %346 = vmatprep.subr.mxu0 0.0
    %347 = vmatpush1.msra.mxu0 %v177
    %348 = vmatprep.subr.mxu0 0.0
    %349 = vmatpush1.msra.mxu0 %v178
    %350 = vmatprep.subr.mxu0 0.0
    %351 = vmatpush1.msra.mxu0 %v179
    %352 = vmatprep.subr.mxu0 0.0
    %353 = vmatpush1.msra.mxu0 %v180
    %354 = vmatprep.subr.mxu0 0.0
    %355 = vmatpush1.msra.mxu0 %v181
    %356 = vmatprep.subr.mxu0 0.0
    %357 = vmatpush1.msra.mxu0 %v182
    %358 = vmatprep.subr.mxu0 0.0
    %359 = vmatpush1.msra.mxu0 %v183
    %360 = vmatprep.mubr.f32.mxu0 %v66
    %361 = vmatmul.mubr.f32.gmra.mrb[0].mxu0 %v54
    %v362 = vpop.f32.mrb[0].mxu0
    %v363 = vadd.f32 0.0, %v362
    %v364 = vpop.f32.mrb[0].mxu0
    %365 = vmatprep.mubr.f32.mxu0 %v67
    %366 = vmatmul.mubr.f32.gmra.mrb[0].mxu0 %v55
    %v367 = vpop.f32.mrb[0].mxu0
    %v368 = vadd.f32 0.0, %v367
    %v369 = vpop.f32.mrb[0].mxu0
    %370 = vdwg.mxu0
    %371 = vmatprep.subr.mxu0 0.0
    %372 = vmatpush1.msra.mxu0 %v184
    %373 = vmatprep.subr.mxu0 0.0
    %374 = vmatpush1.msra.mxu0 %v185
    %375 = vmatprep.subr.mxu0 0.0
    %376 = vmatpush1.msra.mxu0 %v186
    %377 = vmatprep.subr.mxu0 0.0
    %378 = vmatpush1.msra.mxu0 %v187
    %379 = vmatprep.subr.mxu0 0.0
    %380 = vmatpush1.msra.mxu0 %v188
    %381 = vmatprep.subr.mxu0 0.0
    %382 = vmatpush1.msra.mxu0 %v189
    %383 = vmatprep.subr.mxu0 0.0
    %384 = vmatpush1.msra.mxu0 %v190
    %385 = vmatprep.subr.mxu0 0.0
    %386 = vmatpush1.msra.mxu0 %v191
    %387 = vmatprep.subr.mxu0 0.0
    %388 = vmatpush1.msra.mxu0 %v192
    %389 = vmatprep.subr.mxu0 0.0
    %390 = vmatpush1.msra.mxu0 %v193
    %391 = vmatprep.subr.mxu0 0.0
    %392 = vmatpush1.msra.mxu0 %v194
    %393 = vmatprep.subr.mxu0 0.0
    %394 = vmatpush1.msra.mxu0 %v195
    %395 = vmatprep.subr.mxu0 0.0
    %396 = vmatpush1.msra.mxu0 %v196
    %397 = vmatprep.subr.mxu0 0.0
    %398 = vmatpush1.msra.mxu0 %v197
    %399 = vmatprep.subr.mxu0 0.0
    %400 = vmatpush1.msra.mxu0 %v198
    %401 = vmatprep.subr.mxu0 0.0
    %402 = vmatpush1.msra.mxu0 %v199
    %403 = vmatprep.subr.mxu0 0.0
    %404 = vmatpush1.msra.mxu0 %v200
    %405 = vmatprep.subr.mxu0 0.0
    %406 = vmatpush1.msra.mxu0 %v201
    %407 = vmatprep.subr.mxu0 0.0
    %408 = vmatpush1.msra.mxu0 %v202
    %409 = vmatprep.subr.mxu0 0.0
    %410 = vmatpush1.msra.mxu0 %v203
    %411 = vmatprep.subr.mxu0 0.0
    %412 = vmatpush1.msra.mxu0 %v204
    %413 = vmatprep.subr.mxu0 0.0
    %414 = vmatpush1.msra.mxu0 %v205
    %415 = vmatprep.subr.mxu0 0.0
    %416 = vmatpush1.msra.mxu0 %v206
    %417 = vmatprep.subr.mxu0 0.0
    %418 = vmatpush1.msra.mxu0 %v207
    %419 = vmatprep.subr.mxu0 0.0
    %420 = vmatpush1.msra.mxu0 %v208
    %421 = vmatprep.subr.mxu0 0.0
    %422 = vmatpush1.msra.mxu0 %v209
    %423 = vmatprep.subr.mxu0 0.0
    %424 = vmatpush1.msra.mxu0 %v210
    %425 = vmatprep.subr.mxu0 0.0
    %426 = vmatpush1.msra.mxu0 %v211
    %427 = vmatprep.subr.mxu0 0.0
    %428 = vmatpush1.msra.mxu0 %v212
    %429 = vmatprep.subr.mxu0 0.0
    %430 = vmatpush1.msra.mxu0 %v213
    %431 = vmatprep.subr.mxu0 0.0
    %432 = vmatpush1.msra.mxu0 %v214
    %433 = vmatprep.subr.mxu0 0.0
    %434 = vmatpush1.msra.mxu0 %v215
    %435 = vmatprep.mubr.f32.mxu0 %v90
    %436 = vmatmul.mubr.f32.gmra.mrb[0].mxu0 %v78
    %v437 = vpop.f32.mrb[0].mxu0
    %v438 = vadd.f32 %v363, %v437
    %v439 = vpop.f32.mrb[0].mxu0
    %440 = vmatprep.mubr.f32.mxu0 %v91
    %441 = vmatmul.mubr.f32.gmra.mrb[0].mxu0 %v79
    %v442 = vpop.f32.mrb[0].mxu0
    %v443 = vadd.f32 %v368, %v442
    %v444 = vpop.f32.mrb[0].mxu0
    %445 = vdwg.mxu0
    %446 = vmatprep.subr.mxu0 0.0
    %447 = vmatpush1.msra.mxu0 %v216
    %448 = vmatprep.subr.mxu0 0.0
    %449 = vmatpush1.msra.mxu0 %v217
    %450 = vmatprep.subr.mxu0 0.0
    %451 = vmatpush1.msra.mxu0 %v218
    %452 = vmatprep.subr.mxu0 0.0
    %453 = vmatpush1.msra.mxu0 %v219
    %454 = vmatprep.subr.mxu0 0.0
    %455 = vmatpush1.msra.mxu0 %v220
    %456 = vmatprep.subr.mxu0 0.0
    %457 = vmatpush1.msra.mxu0 %v221
    %458 = vmatprep.subr.mxu0 0.0
    %459 = vmatpush1.msra.mxu0 %v222
    %460 = vmatprep.subr.mxu0 0.0
    %461 = vmatpush1.msra.mxu0 %v223
    %462 = vmatprep.subr.mxu0 0.0
    %463 = vmatpush1.msra.mxu0 %v224
    %464 = vmatprep.subr.mxu0 0.0
    %465 = vmatpush1.msra.mxu0 %v225
    %466 = vmatprep.subr.mxu0 0.0
    %467 = vmatpush1.msra.mxu0 %v226
    %468 = vmatprep.subr.mxu0 0.0
    %469 = vmatpush1.msra.mxu0 %v227
    %470 = vmatprep.subr.mxu0 0.0
    %471 = vmatpush1.msra.mxu0 %v228
    %472 = vmatprep.subr.mxu0 0.0
    %473 = vmatpush1.msra.mxu0 %v229
    %474 = vmatprep.subr.mxu0 0.0
    %475 = vmatpush1.msra.mxu0 %v230
    %476 = vmatprep.subr.mxu0 0.0
    %477 = vmatpush1.msra.mxu0 %v231
    %478 = vmatprep.subr.mxu0 0.0
    %479 = vmatpush1.msra.mxu0 %v232
    %480 = vmatprep.subr.mxu0 0.0
    %481 = vmatpush1.msra.mxu0 %v233
    %482 = vmatprep.subr.mxu0 0.0
    %483 = vmatpush1.msra.mxu0 %v234
    %484 = vmatprep.subr.mxu0 0.0
    %485 = vmatpush1.msra.mxu0 %v235
    %486 = vmatprep.subr.mxu0 0.0
    %487 = vmatpush1.msra.mxu0 %v236
    %488 = vmatprep.subr.mxu0 0.0
    %489 = vmatpush1.msra.mxu0 %v237
    %490 = vmatprep.subr.mxu0 0.0
    %491 = vmatpush1.msra.mxu0 %v238
    %492 = vmatprep.subr.mxu0 0.0
    %493 = vmatpush1.msra.mxu0 %v239
    %494 = vmatprep.subr.mxu0 0.0
    %495 = vmatpush1.msra.mxu0 %v240
    %496 = vmatprep.subr.mxu0 0.0
    %497 = vmatpush1.msra.mxu0 %v241
    %498 = vmatprep.subr.mxu0 0.0
    %499 = vmatpush1.msra.mxu0 %v242
    %500 = vmatprep.subr.mxu0 0.0
    %501 = vmatpush1.msra.mxu0 %v243
    %502 = vmatprep.subr.mxu0 0.0
    %503 = vmatpush1.msra.mxu0 %v244
    %504 = vmatprep.subr.mxu0 0.0
    %505 = vmatpush1.msra.mxu0 %v245
    %506 = vmatprep.subr.mxu0 0.0
    %507 = vmatpush1.msra.mxu0 %v246
    %508 = vmatprep.subr.mxu0 0.0
    %509 = vmatpush1.msra.mxu0 %v247
    %510 = vmatprep.mubr.f32.mxu0 %v114
    %511 = vmatmul.mubr.f32.gmra.mrb[0].mxu0 %v102
    %v512 = vpop.f32.mrb[0].mxu0
    %v513 = vadd.f32 %v438, %v512
    %v514 = vpop.f32.mrb[0].mxu0
    %515 = vmatprep.mubr.f32.mxu0 %v115
    %516 = vmatmul.mubr.f32.gmra.mrb[0].mxu0 %v103
    %v517 = vpop.f32.mrb[0].mxu0
    %v518 = vadd.f32 %v443, %v517
    %v519 = vpop.f32.mrb[0].mxu0
    %520 = vdwg.mxu0
    %521 = vmatprep.subr.mxu0 0.0
    %522 = vmatpush1.msra.mxu0 %v248
    %523 = vmatprep.subr.mxu0 0.0
    %524 = vmatpush1.msra.mxu0 %v249
    %525 = vmatprep.subr.mxu0 0.0
    %526 = vmatpush1.msra.mxu0 %v250
    %527 = vmatprep.subr.mxu0 0.0
    %528 = vmatpush1.msra.mxu0 %v251
    %529 = vmatprep.subr.mxu0 0.0
    %530 = vmatpush1.msra.mxu0 %v252
    %531 = vmatprep.subr.mxu0 0.0
    %532 = vmatpush1.msra.mxu0 %v253
    %533 = vmatprep.subr.mxu0 0.0
    %534 = vmatpush1.msra.mxu0 %v254
    %535 = vmatprep.subr.mxu0 0.0
    %536 = vmatpush1.msra.mxu0 %v255
    %537 = vmatprep.subr.mxu0 0.0
    %538 = vmatpush1.msra.mxu0 %v256
    %539 = vmatprep.subr.mxu0 0.0
    %540 = vmatpush1.msra.mxu0 %v257
    %541 = vmatprep.subr.mxu0 0.0
    %542 = vmatpush1.msra.mxu0 %v258
    %543 = vmatprep.subr.mxu0 0.0
    %544 = vmatpush1.msra.mxu0 %v259
    %545 = vmatprep.subr.mxu0 0.0
    %546 = vmatpush1.msra.mxu0 %v260
    %547 = vmatprep.subr.mxu0 0.0
    %548 = vmatpush1.msra.mxu0 %v261
    %549 = vmatprep.subr.mxu0 0.0
    %550 = vmatpush1.msra.mxu0 %v262
    %551 = vmatprep.subr.mxu0 0.0
    %552 = vmatpush1.msra.mxu0 %v263
    %553 = vmatprep.subr.mxu0 0.0
    %554 = vmatpush1.msra.mxu0 %v264
    %555 = vmatprep.subr.mxu0 0.0
    %556 = vmatpush1.msra.mxu0 %v265
    %557 = vmatprep.subr.mxu0 0.0
    %558 = vmatpush1.msra.mxu0 %v266
    %559 = vmatprep.subr.mxu0 0.0
    %560 = vmatpush1.msra.mxu0 %v267
    %561 = vmatprep.subr.mxu0 0.0
    %562 = vmatpush1.msra.mxu0 %v268
    %563 = vmatprep.subr.mxu0 0.0
    %564 = vmatpush1.msra.mxu0 %v269
    %565 = vmatprep.subr.mxu0 0.0
    %566 = vmatpush1.msra.mxu0 %v270
    %567 = vmatprep.subr.mxu0 0.0
    %568 = vmatpush1.msra.mxu0 %v271
    %569 = vmatprep.subr.mxu0 0.0
    %570 = vmatpush1.msra.mxu0 %v272
    %571 = vmatprep.subr.mxu0 0.0
    %572 = vmatpush1.msra.mxu0 %v273
    %573 = vmatprep.subr.mxu0 0.0
    %574 = vmatpush1.msra.mxu0 %v274
    %575 = vmatprep.subr.mxu0 0.0
    %576 = vmatpush1.msra.mxu0 %v275
    %577 = vmatprep.subr.mxu0 0.0
    %578 = vmatpush1.msra.mxu0 %v276
    %579 = vmatprep.subr.mxu0 0.0
    %580 = vmatpush1.msra.mxu0 %v277
    %581 = vmatprep.subr.mxu0 0.0
    %582 = vmatpush1.msra.mxu0 %v278
    %583 = vmatprep.subr.mxu0 0.0
    %584 = vmatpush1.msra.mxu0 %v279
    %585 = vmatprep.mubr.f32.mxu0 %v138
    %586 = vmatmul.mubr.f32.gmra.mrb[0].mxu0 %v126
    %v587 = vpop.f32.mrb[0].mxu0
    %v588 = vadd.f32 %v513, %v587
    %v589 = vpop.f32.mrb[0].mxu0
    %590 = vmatprep.mubr.f32.mxu0 %v139
    %591 = vmatmul.mubr.f32.gmra.mrb[0].mxu0 %v127
    %v592 = vpop.f32.mrb[0].mxu0
    %v593 = vadd.f32 %v518, %v592
    %v594 = vpop.f32.mrb[0].mxu0
    %595 = vdwg.mxu0
    %596 = vmatprep.subr.mxu0 0.0
    %597 = vmatpush1.msra.mxu0 %v280
    %598 = vmatprep.subr.mxu0 0.0
    %599 = vmatpush1.msra.mxu0 %v281
    %600 = vmatprep.subr.mxu0 0.0
    %601 = vmatpush1.msra.mxu0 %v282
    %602 = vmatprep.subr.mxu0 0.0
    %603 = vmatpush1.msra.mxu0 %v283
    %604 = vmatprep.subr.mxu0 0.0
    %605 = vmatpush1.msra.mxu0 %v284
    %606 = vmatprep.subr.mxu0 0.0
    %607 = vmatpush1.msra.mxu0 %v285
    %608 = vmatprep.subr.mxu0 0.0
    %609 = vmatpush1.msra.mxu0 %v286
    %610 = vmatprep.subr.mxu0 0.0
    %611 = vmatpush1.msra.mxu0 %v287
    %612 = vmatprep.subr.mxu0 0.0
    %613 = vmatpush1.msra.mxu0 %v288
    %614 = vmatprep.subr.mxu0 0.0
    %615 = vmatpush1.msra.mxu0 %v289
    %616 = vmatprep.subr.mxu0 0.0
    %617 = vmatpush1.msra.mxu0 %v290
    %618 = vmatprep.subr.mxu0 0.0
    %619 = vmatpush1.msra.mxu0 %v291
    %620 = vmatprep.subr.mxu0 0.0
    %621 = vmatpush1.msra.mxu0 %v292
    %622 = vmatprep.subr.mxu0 0.0
    %623 = vmatpush1.msra.mxu0 %v293
    %624 = vmatprep.subr.mxu0 0.0
    %625 = vmatpush1.msra.mxu0 %v294
    %626 = vmatprep.subr.mxu0 0.0
    %627 = vmatpush1.msra.mxu0 %v295
    %628 = vmatprep.subr.mxu0 0.0
    %629 = vmatpush1.msra.mxu0 0.0
    %630 = vmatprep.subr.mxu0 0.0
    %631 = vmatpush1.msra.mxu0 0.0
    %632 = vmatprep.subr.mxu0 0.0
    %633 = vmatpush1.msra.mxu0 0.0
    %634 = vmatprep.subr.mxu0 0.0
    %635 = vmatpush1.msra.mxu0 0.0
    %636 = vmatprep.subr.mxu0 0.0
    %637 = vmatpush1.msra.mxu0 0.0
    %638 = vmatprep.subr.mxu0 0.0
    %639 = vmatpush1.msra.mxu0 0.0
    %640 = vmatprep.subr.mxu0 0.0
    %641 = vmatpush1.msra.mxu0 0.0
    %642 = vmatprep.subr.mxu0 0.0
    %643 = vmatpush1.msra.mxu0 0.0
    %644 = vmatprep.subr.mxu0 0.0
    %645 = vmatpush1.msra.mxu0 0.0
    %646 = vmatprep.subr.mxu0 0.0
    %647 = vmatpush1.msra.mxu0 0.0
    %648 = vmatprep.subr.mxu0 0.0
    %649 = vmatpush1.msra.mxu0 0.0
    %650 = vmatprep.subr.mxu0 0.0
    %651 = vmatpush1.msra.mxu0 0.0
    %652 = vmatprep.subr.mxu0 0.0
    %653 = vmatpush1.msra.mxu0 0.0
    %654 = vmatprep.subr.mxu0 0.0
    %655 = vmatpush1.msra.mxu0 0.0
    %656 = vmatprep.subr.mxu0 0.0
    %657 = vmatpush1.msra.mxu0 0.0
    %658 = vmatprep.subr.mxu0 0.0
    %659 = vmatpush1.msra.mxu0 0.0
    %660 = vmatprep.mubr.f32.mxu0 0.0
    %661 = vmatmul.mubr.f32.gmra.mrb[0].mxu0 %v150
    %v662 = vpop.f32.mrb[0].mxu0
    %v663 = vadd.f32 %v588, %v662
    %v664 = vpop.f32.mrb[0].mxu0
    %665 = vmatprep.mubr.f32.mxu0 0.0
    %666 = vmatmul.mubr.f32.gmra.mrb[0].mxu0 %v151
    %v667 = vpop.f32.mrb[0].mxu0
    %v668 = vadd.f32 %v593, %v667
    %v669 = vpop.f32.mrb[0].mxu0
    %670 = vdwg.mxu0
    %671 = vst [vmem:[#allocation7] sm:$0xff] %v663
    %672 = vst [vmem:[#allocation7 + $0x8] sm:$0xff] %v668
    // Predicated region
    $region18: #{tpu_custom_call.1} parent=1 // pred_check
      _
    $region19: #{tpu_custom_call.1} parent=1 // pred_check_branch
      %674 = sbr.rel (0) target = $region21
    $region20: #{tpu_custom_call.1} parent=1 // pred_region
      %s676 = ssub.s32 256, 256
      %677 = vsyncadd [#allocation4], %s676
      %s678 = sshll.u32 [#allocation7], 4
      %s679 = int_to_ptr.vmem [resolvable:$true] %s678
      %684 = dma.vmem_to_hbm [thread:$0]  %s679, 256, %s2, [#allocation4], 128, 128, 8
    $region21: #{tpu_custom_call.1} parent=1 // pred_fallthru
      _
    // Predicated region
    $region22: #{tpu_custom_call.1} parent=1 // pred_check
      _
    $region23: #{tpu_custom_call.1} parent=1 // pred_check_branch
      %686 = sbr.rel (0) target = $region25
    $region24: #{tpu_custom_call.1} parent=1 // pred_region
      %687 = dma.done [#allocation4], 256
    $region25: #{tpu_custom_call.1} parent=1 // pred_fallthru
      _
    %688 = vsyncpa [#allocation3], 1
    %689 = vsyncpa [#allocation6], 1
    %690 = vsyncpa [#allocation4], 1

</llo_original>
